<compile_context>
chip_gen: v7x
topology: tpu7x:2x2x1
jax: 0.10.0
libtpu: 0.0.40
codegen_flags: <defaults>
</compile_context>

<pallas_src>
import functools

import jax
import jax.numpy as jnp
from jax.experimental import pallas as pl
from jax.experimental.pallas import tpu as pltpu

LANE = 128
_SMOOTH_NR = 1e-5
_SMOOTH_DR = 1e-5
# f32-equivalent VMEM budget for one seg block (review: ~1 MiB reaches ~85% of
# the HBM roofline while leaving headroom for in-kernel temporaries).
_VMEM_BUDGET_PER_BUFFER = 1 * 1024 * 1024


def _cdiv(a, b):
    return -(-a // b)


def _round_up(a, b):
    return _cdiv(a, b) * b


def _sublane_multiple(itemsize):
    # VMEM sublane tiling: f32 -> 8, bf16 -> 16, int8 -> 32.
    return {4: 8, 2: 16, 1: 32}.get(itemsize, 8)


def _num_parallel_chunks():
    """2 spatial chunks on v7x (2 TensorCores/chip), 1 on v5e/v6e."""
    try:
        kind = jax.devices()[0].device_kind.lower()
    except Exception:
        return 1
    return 2 if ("v7" in kind or "7x" in kind) else 1


def _vmem_capacity_bytes():
    try:
        return int(pltpu.get_tpu_info().vmem_capacity_bytes)
    except Exception:
        return 64 << 20  # conservative (v7x per-TensorCore)


def _dice_ce_kernel(seg_ref, tgt_ref, cls_logits_ref, cls_tgt_ref,
                    inter_ref, pred_ref, grnd_ref, cls_out_ref,
                    *, t_hw, n_inner, hw_true, hw_covered):
    p = pl.program_id(0)
    k = pl.program_id(1)

    # ---- init per-(b, c) accumulators for this parallel chunk ----
    @pl.when(k == 0)
    def _init():
        inter_ref[...] = jnp.zeros_like(inter_ref)
        pred_ref[...] = jnp.zeros_like(pred_ref)
        grnd_ref[...] = jnp.zeros_like(grnd_ref)

    # ---- tiny cross-entropy head: run exactly once; only cls_out[0] is read ----
    @pl.when(jnp.logical_and(k == 0, p == 0))
    def _cls():
        cl = cls_logits_ref[...].astype(jnp.float32)               # (B, NC)
        ct = cls_tgt_ref[...]                                      # (B, 1) int32
        cm = jnp.max(cl, axis=1, keepdims=True)
        lse = jnp.log(jnp.sum(jnp.exp(cl - cm), axis=1, keepdims=True)) + cm
        onehot_c = jax.lax.broadcasted_iota(jnp.int32, cl.shape, 1) == ct
        picked = jnp.sum(jnp.where(onehot_c, cl, 0.0), axis=1, keepdims=True)
        # per-sample NLL; mean is taken in the JAX epilogue
        cls_out_ref[...] = (lse - picked).reshape(cls_out_ref.shape)

    # ---- channel softmax over this spatial tile ----
    xs = seg_ref[...]                                              # (B, C, T) native dtype
    # bf16 callers: keep max/exp in bf16 (bf16 VPU/EUP on v6e/v7x); f32 accumulation.
    x = xs if xs.dtype == jnp.bfloat16 else xs.astype(jnp.float32)
    B, C, T = x.shape
    m = jnp.max(x, axis=1, keepdims=True)                          # (B, 1, T)
    e = jnp.exp(x - m).astype(jnp.float32)
    s = jnp.sum(e, axis=1, keepdims=True)                          # (B, 1, T)
    probs = e * pl.reciprocal(s, approx=False)                     # exact; EUP has slack

    tgt = tgt_ref[...].astype(jnp.int32)                           # (B, T)
    onehot = jax.lax.broadcasted_iota(jnp.int32, (B, C, T), 1) == tgt[:, None, :]

    def _accumulate(pr, oh_bool):
        oh = oh_bool.astype(jnp.float32)                           # reused for inter & grnd
        inter_ref[0] += jnp.sum(pr * oh, axis=-1)                  # (B, C)
        pred_ref[0] += jnp.sum(pr, axis=-1)                        # (B, C)
        grnd_ref[0] += jnp.sum(oh, axis=-1)                        # (B, C)

    if hw_covered == hw_true:
        # every tile fully in bounds: no mask work at all
        _accumulate(probs, onehot)
    else:
        start = (p * n_inner + k) * t_hw
        tile_full = start + t_hw <= hw_true

        @pl.when(tile_full)
        def _full():
            _accumulate(probs, onehot)

        @pl.when(jnp.logical_not(tile_full))
        def _ragged():
            # Masks applied BEFORE the sums: keeps garbage/NaN from the
            # unspecified tail of a partial block out of the accumulators.
            pos = jax.lax.broadcasted_iota(jnp.int32, (B, T), 1) + start
            valid = (pos < hw_true)[:, None, :]                    # (B, 1, T)
            _accumulate(jnp.where(valid, probs, 0.0), onehot & valid)


def multitask_loss(seg_output, seg_target, cls_output, cls_target,
                   seg_alpha=1.0, cls_alpha=1.0):
    """Returns (total_loss, loss_seg, loss_cls), matching MultiTaskLoss.forward."""
    B, C, H, W = seg_output.shape
    HW = H * W
    NC = cls_output.shape[1]

    # Free reshapes only — no extra XLA pad / dtype-convert pass over HBM.
    seg = seg_output.reshape(B, C, HW)
    tgt = seg_target.reshape(B, HW)
    if tgt.dtype not in (jnp.int8, jnp.uint8, jnp.int32, jnp.uint32):
        tgt = tgt.astype(jnp.int32)
    cls_tgt = cls_target.reshape(B, 1).astype(jnp.int32)

    n_par = _num_parallel_chunks()

    # ---- spatial tile: ~1 MiB f32-equivalent seg block ----
    f32_bytes_per_pos = B * _round_up(C, 8) * 4
    t_hw = max(LANE, (_VMEM_BUDGET_PER_BUFFER // f32_bytes_per_pos) // LANE * LANE)
    t_hw = min(t_hw, _round_up(_cdiv(HW, n_par), LANE))
    n_blocks = _cdiv(HW, t_hw)
    n_par = min(n_par, n_blocks)
    n_inner = _cdiv(n_blocks, n_par)
    hw_covered = n_par * n_inner * t_hw        # != HW => in-kernel tail mask active

    # ---- scoped-VMEM budget: double-buffered inputs (real sublane padding)
    #      + ~8 full-block f32/i32 elementwise temporaries; generation-aware cap ----
    seg_item = jnp.dtype(seg.dtype).itemsize
    tgt_item = jnp.dtype(tgt.dtype).itemsize
    seg_block = B * _round_up(C, _sublane_multiple(seg_item)) * t_hw * seg_item
    tgt_block = _round_up(B, _sublane_multiple(tgt_item)) * t_hw * tgt_item
    f32_block = B * _round_up(C, 8) * t_hw * 4
    est = 2 * (seg_block + tgt_block) + 8 * f32_block + (2 << 20)
    vmem_limit = int(min(3 * _vmem_capacity_bytes() // 4, max(24 << 20, est)))

    # Clamp the spatial block index so a (rare) dead block on the last parallel
    # chunk never maps fully out of bounds; its contribution is zeroed by the mask.
    last_blk = n_blocks - 1
    seg_map = lambda p, k: (0, 0, jnp.minimum(p * n_inner + k, last_blk))
    tgt_map = lambda p, k: (0, jnp.minimum(p * n_inner + k, last_blk))

    kernel = functools.partial(_dice_ce_kernel, t_hw=t_hw, n_inner=n_inner,
                               hw_true=HW, hw_covered=hw_covered)

    stats_shape = jax.ShapeDtypeStruct((n_par, B, C), jnp.float32)
    # TODO(synk): on v7x, verify with a profile that the leading "parallel" axis
    # shards across both TensorCores; if not, switch it to pltpu.CORE_PARALLEL.
    inter_p, pred_p, grnd_p, cls_p = pl.pallas_call(
        kernel,
        grid=(n_par, n_inner),
        in_specs=[
            pl.BlockSpec((B, C, t_hw), seg_map),
            pl.BlockSpec((B, t_hw), tgt_map),
            pl.BlockSpec((B, NC), lambda p, k: (0, 0)),
            pl.BlockSpec((B, 1), lambda p, k: (0, 0)),
        ],
        out_specs=(
            pl.BlockSpec((1, B, C), lambda p, k: (p, 0, 0)),
            pl.BlockSpec((1, B, C), lambda p, k: (p, 0, 0)),
            pl.BlockSpec((1, B, C), lambda p, k: (p, 0, 0)),
            pl.BlockSpec((1, B, 1), lambda p, k: (p, 0, 0)),
        ),
        out_shape=(stats_shape, stats_shape, stats_shape,
                   jax.ShapeDtypeStruct((n_par, B, 1), jnp.float32)),
        compiler_params=pltpu.CompilerParams(
            dimension_semantics=("parallel", "arbitrary"),
            vmem_limit_bytes=vmem_limit),
    )(seg, tgt, cls_output, cls_tgt)

    # ---- tiny scalar epilogue in plain JAX (merges per-chunk partial sums) ----
    inter = jnp.sum(inter_p, axis=0)          # (B, C)
    pred_o = jnp.sum(pred_p, axis=0)          # (B, C)
    ground_o = jnp.sum(grnd_p, axis=0)        # (B, C)
    dice = 1.0 - (2.0 * inter + _SMOOTH_NR) / (ground_o + pred_o + _SMOOTH_DR)
    loss_seg = jnp.mean(dice)
    loss_cls = jnp.mean(cls_p[0, :, 0])
    total = seg_alpha * loss_seg + cls_alpha * loss_cls + 1e-8
    return total, loss_seg, loss_cls


def _reference(seg_output, seg_target, cls_output, cls_target,
               seg_alpha=1.0, cls_alpha=1.0):
    """Pure-JAX reference (no Pallas) for correctness checking."""
    B, C, H, W = seg_output.shape
    probs = jax.nn.softmax(seg_output.astype(jnp.float32), axis=1)
    onehot = jax.nn.one_hot(seg_target.reshape(B, H, W), C, axis=1, dtype=jnp.float32)
    axes = (2, 3)
    inter = jnp.sum(probs * onehot, axis=axes)
    pred_o = jnp.sum(probs, axis=axes)
    ground_o = jnp.sum(onehot, axis=axes)
    dice = 1.0 - (2.0 * inter + 1e-5) / (ground_o + pred_o + 1e-5)
    loss_seg = jnp.mean(dice)

    logp = jax.nn.log_softmax(cls_output.astype(jnp.float32), axis=1)
    loss_cls = -jnp.mean(jnp.take_along_axis(logp, cls_target[:, None], axis=1))

    total = seg_alpha * loss_seg + cls_alpha * loss_cls + 1e-8
    return total, loss_seg, loss_cls


def _check(B, C_SEG, H, W, NUM_CLS, seed):
    key = jax.random.PRNGKey(seed)
    k1, k2, k3, k4 = jax.random.split(key, 4)
    seg_output = jax.random.normal(k1, (B, C_SEG, H, W), dtype=jnp.float32)
    seg_target = jax.random.randint(k2, (B, 1, H, W), 0, C_SEG, dtype=jnp.int32)
    cls_output = jax.random.normal(k3, (B, NUM_CLS), dtype=jnp.float32)
    cls_target = jax.random.randint(k4, (B,), 0, NUM_CLS, dtype=jnp.int32)

    total, loss_seg, loss_cls = multitask_loss(seg_output, seg_target,
                                               cls_output, cls_target)
    jax.block_until_ready((total, loss_seg, loss_cls))

    ref_total, ref_seg, ref_cls = _reference(seg_output, seg_target,
                                             cls_output, cls_target)
    assert jnp.allclose(total, ref_total, atol=1e-3, rtol=1e-3), (total, ref_total)
    assert jnp.allclose(loss_seg, ref_seg, atol=1e-3, rtol=1e-3), (loss_seg, ref_seg)
    assert jnp.allclose(loss_cls, ref_cls, atol=1e-3, rtol=1e-3), (loss_cls, ref_cls)


if __name__ == "__main__":
    # Small shapes consistent with the module (B, C_seg, H, W) + (B, NUM_CLS).
    _check(B=2, C_SEG=4, H=16, W=16, NUM_CLS=5, seed=0)
    # Non-128-divisible spatial size exercises the ragged-tail (partial block) path.
    _check(B=2, C_SEG=4, H=10, W=10, NUM_CLS=5, seed=0)
    print("KERNEL_OK")
</pallas_src>

<mosaic_0001>
module attributes {stable_mosaic.version = 11 : i64} {
  func.func @_dice_ce_kernel(%arg0: i32, %arg1: i32, %arg2: memref<2x4x256xf32, #tpu.memory_space<vmem>>, %arg3: memref<2x256xi32, #tpu.memory_space<vmem>>, %arg4: memref<2x5xf32, #tpu.memory_space<vmem>>, %arg5: memref<2x1xi32, #tpu.memory_space<vmem>>, %arg6: memref<1x2x4xf32, #tpu.memory_space<vmem>>, %arg7: memref<1x2x4xf32, #tpu.memory_space<vmem>>, %arg8: memref<1x2x4xf32, #tpu.memory_space<vmem>>, %arg9: memref<1x2x1xf32, #tpu.memory_space<vmem>>) attributes {dimension_semantics = [#tpu.dimension_semantics<parallel>, #tpu.dimension_semantics<arbitrary>], iteration_bounds = array<i64: 1, 1>, scalar_prefetch = 0 : i64, scratch_operands = 0 : i64, tpu.core_type = #tpu.core_type<tc>, window_params = [{transform_indices = @transform_0, window_bounds = array<i64: 2, 4, 256>}, {transform_indices = @transform_1, window_bounds = array<i64: 2, 256>}, {pipeline_mode = #tpu.pipeline_mode<synchronous>, transform_indices = @transform_2, window_bounds = array<i64: 2, 5>}, {pipeline_mode = #tpu.pipeline_mode<synchronous>, transform_indices = @transform_3, window_bounds = array<i64: 2, 1>}, {transform_indices = @transform_4, window_bounds = array<i64: 1, 2, 4>}, {transform_indices = @transform_5, window_bounds = array<i64: 1, 2, 4>}, {transform_indices = @transform_6, window_bounds = array<i64: 1, 2, 4>}, {transform_indices = @transform_7, window_bounds = array<i64: 1, 2, 1>}]} {
    %c0_i32 = arith.constant 0 : i32
    %0 = arith.cmpi eq, %arg1, %c0_i32 : i32
    %1 = arith.extui %0 : i1 to i32
    %c0_i32_0 = arith.constant 0 : i32
    %2 = arith.cmpi ne, %1, %c0_i32_0 : i32
    scf.if %2 {
      %cst_30 = arith.constant 0.000000e+00 : f32
      %48 = vector.broadcast %cst_30 : f32 to vector<1x2x4xf32>
      %c0_31 = arith.constant 0 : index
      %c0_32 = arith.constant 0 : index
      %c0_33 = arith.constant 0 : index
      %49 = vector.load %arg6[%c0_31, %c0_32, %c0_33] : memref<1x2x4xf32, #tpu.memory_space<vmem>>, vector<1x2x4xf32>
      tpu.vector_store %arg6[%c0_31, %c0_32, %c0_33], %48 {strides = array<i32>} : memref<1x2x4xf32, #tpu.memory_space<vmem>>, vector<1x2x4xf32>,
      %cst_34 = arith.constant 0.000000e+00 : f32
      %50 = vector.broadcast %cst_34 : f32 to vector<1x2x4xf32>
      %c0_35 = arith.constant 0 : index
      %c0_36 = arith.constant 0 : index
      %c0_37 = arith.constant 0 : index
      %51 = vector.load %arg7[%c0_35, %c0_36, %c0_37] : memref<1x2x4xf32, #tpu.memory_space<vmem>>, vector<1x2x4xf32>
      tpu.vector_store %arg7[%c0_35, %c0_36, %c0_37], %50 {strides = array<i32>} : memref<1x2x4xf32, #tpu.memory_space<vmem>>, vector<1x2x4xf32>,
      %cst_38 = arith.constant 0.000000e+00 : f32
      %52 = vector.broadcast %cst_38 : f32 to vector<1x2x4xf32>
      %c0_39 = arith.constant 0 : index
      %c0_40 = arith.constant 0 : index
      %c0_41 = arith.constant 0 : index
      %53 = vector.load %arg8[%c0_39, %c0_40, %c0_41] : memref<1x2x4xf32, #tpu.memory_space<vmem>>, vector<1x2x4xf32>
      tpu.vector_store %arg8[%c0_39, %c0_40, %c0_41], %52 {strides = array<i32>} : memref<1x2x4xf32, #tpu.memory_space<vmem>>, vector<1x2x4xf32>,
    } else {
    }
    %c0_i32_1 = arith.constant 0 : i32
    %3 = arith.cmpi eq, %arg1, %c0_i32_1 : i32
    %c0_i32_2 = arith.constant 0 : i32
    %4 = arith.cmpi eq, %arg0, %c0_i32_2 : i32
    %5 = arith.andi %3, %4 : i1
    %6 = arith.extui %5 : i1 to i32
    %c0_i32_3 = arith.constant 0 : i32
    %7 = arith.cmpi ne, %6, %c0_i32_3 : i32
    scf.if %7 {
      %c0_30 = arith.constant 0 : index
      %c0_31 = arith.constant 0 : index
      %48 = vector.load %arg4[%c0_30, %c0_31] : memref<2x5xf32, #tpu.memory_space<vmem>>, vector<2x5xf32>
      %c0_32 = arith.constant 0 : index
      %c0_33 = arith.constant 0 : index
      %49 = vector.load %arg5[%c0_32, %c0_33] : memref<2x1xi32, #tpu.memory_space<vmem>>, vector<2x1xi32>
      %cst_34 = arith.constant dense<0xFF800000> : vector<2xf32>
      %50 = vector.multi_reduction <maximumf>, %48, %cst_34 [1] : vector<2x5xf32> to vector<2xf32>
      %51 = vector.shape_cast %50 : vector<2xf32> to vector<2x1xf32>
      %52 = vector.broadcast %51 : vector<2x1xf32> to vector<2x5xf32>
      %53 = arith.subf %48, %52 : vector<2x5xf32>
      %54 = math.exp %53 : vector<2x5xf32>
      %cst_35 = arith.constant dense<0.000000e+00> : vector<2xf32>
      %55 = vector.multi_reduction <add>, %54, %cst_35 [1] : vector<2x5xf32> to vector<2xf32>
      %56 = vector.shape_cast %55 : vector<2xf32> to vector<2x1xf32>
      %57 = math.log %56 : vector<2x1xf32>
      %58 = arith.addf %57, %51 : vector<2x1xf32>
      %59 = tpu.iota {dimensions = array<i32: 1>} : vector<2x5xi32>
      %60 = vector.broadcast %49 : vector<2x1xi32> to vector<2x5xi32>
      %61 = arith.cmpi eq, %59, %60 : vector<2x5xi32>
      %cst_36 = arith.constant 0.000000e+00 : f32
      %62 = vector.broadcast %cst_36 : f32 to vector<2x5xf32>
      %63 = arith.select %61, %48, %62 : vector<2x5xi1>, vector<2x5xf32>
      %cst_37 = arith.constant dense<0.000000e+00> : vector<2xf32>
      %64 = vector.multi_reduction <add>, %63, %cst_37 [1] : vector<2x5xf32> to vector<2xf32>
      %65 = vector.shape_cast %64 : vector<2xf32> to vector<2x1xf32>
      %66 = arith.subf %58, %65 : vector<2x1xf32>
      %67 = vector.shape_cast %66 : vector<2x1xf32> to vector<1x2x1xf32>
      %c0_38 = arith.constant 0 : index
      %c0_39 = arith.constant 0 : index
      %c0_40 = arith.constant 0 : index
      %68 = vector.load %arg9[%c0_38, %c0_39, %c0_40] : memref<1x2x1xf32, #tpu.memory_space<vmem>>, vector<1x2x1xf32>
      tpu.vector_store %arg9[%c0_38, %c0_39, %c0_40], %67 {strides = array<i32>} : memref<1x2x1xf32, #tpu.memory_space<vmem>>, vector<1x2x1xf32>,
    } else {
    }
    %c0 = arith.constant 0 : index
    %c0_4 = arith.constant 0 : index
    %c0_5 = arith.constant 0 : index
    %8 = vector.load %arg2[%c0, %c0_4, %c0_5] : memref<2x4x256xf32, #tpu.memory_space<vmem>>, vector<2x4x256xf32>
    %cst = arith.constant dense<0xFF800000> : vector<2x256xf32>
    %9 = vector.multi_reduction <maximumf>, %8, %cst [1] : vector<2x4x256xf32> to vector<2x256xf32>
    %10 = vector.shape_cast %9 : vector<2x256xf32> to vector<2x1x256xf32>
    %11 = vector.broadcast %10 : vector<2x1x256xf32> to vector<2x4x256xf32>
    %12 = arith.subf %8, %11 : vector<2x4x256xf32>
    %13 = math.exp %12 : vector<2x4x256xf32>
    %cst_6 = arith.constant dense<0.000000e+00> : vector<2x256xf32>
    %14 = vector.multi_reduction <add>, %13, %cst_6 [1] : vector<2x4x256xf32> to vector<2x256xf32>
    %15 = vector.shape_cast %14 : vector<2x256xf32> to vector<2x1x256xf32>
    %16 = tpu.reciprocal %15 : vector<2x1x256xf32> -> vector<2x1x256xf32>
    %17 = vector.broadcast %16 : vector<2x1x256xf32> to vector<2x4x256xf32>
    %18 = arith.mulf %13, %17 : vector<2x4x256xf32>
    %c0_7 = arith.constant 0 : index
    %c0_8 = arith.constant 0 : index
    %19 = vector.load %arg3[%c0_7, %c0_8] : memref<2x256xi32, #tpu.memory_space<vmem>>, vector<2x256xi32>
    %20 = tpu.iota {dimensions = array<i32: 1>} : vector<2x4x256xi32>
    %21 = vector.shape_cast %19 : vector<2x256xi32> to vector<2x1x256xi32>
    %22 = vector.broadcast %21 : vector<2x1x256xi32> to vector<2x4x256xi32>
    %23 = arith.cmpi eq, %20, %22 : vector<2x4x256xi32>
    %24 = arith.extui %23 : vector<2x4x256xi1> to vector<2x4x256xi32>
    %25 = arith.sitofp %24 : vector<2x4x256xi32> to vector<2x4x256xf32>
    %c0_9 = arith.constant 0 : index
    %c0_10 = arith.constant 0 : index
    %c0_11 = arith.constant 0 : index
    %26 = vector.load %arg6[%c0_9, %c0_10, %c0_11] : memref<1x2x4xf32, #tpu.memory_space<vmem>>, vector<1x2x4xf32>
    %27 = vector.shape_cast %26 : vector<1x2x4xf32> to vector<2x4xf32>
    %28 = arith.mulf %18, %25 : vector<2x4x256xf32>
    %cst_12 = arith.constant dense<0.000000e+00> : vector<2x4xf32>
    %29 = vector.multi_reduction <add>, %28, %cst_12 [2] : vector<2x4x256xf32> to vector<2x4xf32>
    %30 = arith.addf %27, %29 : vector<2x4xf32>
    %c0_13 = arith.constant 0 : index
    %c0_14 = arith.constant 0 : index
    %c0_15 = arith.constant 0 : index
    %31 = vector.load %arg6[%c0_13, %c0_14, %c0_15] : memref<1x2x4xf32, #tpu.memory_space<vmem>>, vector<1x2x4xf32>
    %32 = vector.shape_cast %31 : vector<1x2x4xf32> to vector<2x4xf32>
    %33 = vector.shape_cast %30 : vector<2x4xf32> to vector<1x2x4xf32>
    tpu.vector_store %arg6[%c0_13, %c0_14, %c0_15], %33 {strides = array<i32>} : memref<1x2x4xf32, #tpu.memory_space<vmem>>, vector<1x2x4xf32>,
    %c0_16 = arith.constant 0 : index
    %c0_17 = arith.constant 0 : index
    %c0_18 = arith.constant 0 : index
    %34 = vector.load %arg7[%c0_16, %c0_17, %c0_18] : memref<1x2x4xf32, #tpu.memory_space<vmem>>, vector<1x2x4xf32>
    %35 = vector.shape_cast %34 : vector<1x2x4xf32> to vector<2x4xf32>
    %cst_19 = arith.constant dense<0.000000e+00> : vector<2x4xf32>
    %36 = vector.multi_reduction <add>, %18, %cst_19 [2] : vector<2x4x256xf32> to vector<2x4xf32>
    %37 = arith.addf %35, %36 : vector<2x4xf32>
    %c0_20 = arith.constant 0 : index
    %c0_21 = arith.constant 0 : index
    %c0_22 = arith.constant 0 : index
    %38 = vector.load %arg7[%c0_20, %c0_21, %c0_22] : memref<1x2x4xf32, #tpu.memory_space<vmem>>, vector<1x2x4xf32>
    %39 = vector.shape_cast %38 : vector<1x2x4xf32> to vector<2x4xf32>
    %40 = vector.shape_cast %37 : vector<2x4xf32> to vector<1x2x4xf32>
    tpu.vector_store %arg7[%c0_20, %c0_21, %c0_22], %40 {strides = array<i32>} : memref<1x2x4xf32, #tpu.memory_space<vmem>>, vector<1x2x4xf32>,
    %c0_23 = arith.constant 0 : index
    %c0_24 = arith.constant 0 : index
    %c0_25 = arith.constant 0 : index
    %41 = vector.load %arg8[%c0_23, %c0_24, %c0_25] : memref<1x2x4xf32, #tpu.memory_space<vmem>>, vector<1x2x4xf32>
    %42 = vector.shape_cast %41 : vector<1x2x4xf32> to vector<2x4xf32>
    %cst_26 = arith.constant dense<0.000000e+00> : vector<2x4xf32>
    %43 = vector.multi_reduction <add>, %25, %cst_26 [2] : vector<2x4x256xf32> to vector<2x4xf32>
    %44 = arith.addf %42, %43 : vector<2x4xf32>
    %c0_27 = arith.constant 0 : index
    %c0_28 = arith.constant 0 : index
    %c0_29 = arith.constant 0 : index
    %45 = vector.load %arg8[%c0_27, %c0_28, %c0_29] : memref<1x2x4xf32, #tpu.memory_space<vmem>>, vector<1x2x4xf32>
    %46 = vector.shape_cast %45 : vector<1x2x4xf32> to vector<2x4xf32>
    %47 = vector.shape_cast %44 : vector<2x4xf32> to vector<1x2x4xf32>
    tpu.vector_store %arg8[%c0_27, %c0_28, %c0_29], %47 {strides = array<i32>} : memref<1x2x4xf32, #tpu.memory_space<vmem>>, vector<1x2x4xf32>,
    return
  }
  func.func @transform_0(%arg0: i32, %arg1: i32) -> (i32, i32, i32) {
    %c1_i32 = arith.constant 1 : i32
    %0 = arith.muli %arg0, %c1_i32 : i32
    %1 = arith.addi %0, %arg1 : i32
    %c0_i32 = arith.constant 0 : i32
    %2 = arith.minsi %1, %c0_i32 : i32
    %c0_i32_0 = arith.constant 0 : i32
    %c0_i32_1 = arith.constant 0 : i32
    %c0_i32_2 = arith.constant 0 : i32
    return %c0_i32_0, %c0_i32_1, %2 : i32, i32, i32
  }
  func.func @transform_1(%arg0: i32, %arg1: i32) -> (i32, i32) {
    %c1_i32 = arith.constant 1 : i32
    %0 = arith.muli %arg0, %c1_i32 : i32
    %1 = arith.addi %0, %arg1 : i32
    %c0_i32 = arith.constant 0 : i32
    %2 = arith.minsi %1, %c0_i32 : i32
    %c0_i32_0 = arith.constant 0 : i32
    %c0_i32_1 = arith.constant 0 : i32
    return %c0_i32_0, %2 : i32, i32
  }
  func.func @transform_2(%arg0: i32, %arg1: i32) -> (i32, i32) {
    %c0_i32 = arith.constant 0 : i32
    %c0_i32_0 = arith.constant 0 : i32
    %c0_i32_1 = arith.constant 0 : i32
    return %c0_i32, %c0_i32_0 : i32, i32
  }
  func.func @transform_3(%arg0: i32, %arg1: i32) -> (i32, i32) {
    %c0_i32 = arith.constant 0 : i32
    %c0_i32_0 = arith.constant 0 : i32
    %c0_i32_1 = arith.constant 0 : i32
    return %c0_i32, %c0_i32_0 : i32, i32
  }
  func.func @transform_4(%arg0: i32, %arg1: i32) -> (i32, i32, i32) {
    %c0_i32 = arith.constant 0 : i32
    %c0_i32_0 = arith.constant 0 : i32
    %c0_i32_1 = arith.constant 0 : i32
    return %arg0, %c0_i32, %c0_i32_0 : i32, i32, i32
  }
  func.func @transform_5(%arg0: i32, %arg1: i32) -> (i32, i32, i32) {
    %c0_i32 = arith.constant 0 : i32
    %c0_i32_0 = arith.constant 0 : i32
    %c0_i32_1 = arith.constant 0 : i32
    return %arg0, %c0_i32, %c0_i32_0 : i32, i32, i32
  }
  func.func @transform_6(%arg0: i32, %arg1: i32) -> (i32, i32, i32) {
    %c0_i32 = arith.constant 0 : i32
    %c0_i32_0 = arith.constant 0 : i32
    %c0_i32_1 = arith.constant 0 : i32
    return %arg0, %c0_i32, %c0_i32_0 : i32, i32, i32
  }
  func.func @transform_7(%arg0: i32, %arg1: i32) -> (i32, i32, i32) {
    %c0_i32 = arith.constant 0 : i32
    %c0_i32_0 = arith.constant 0 : i32
    %c0_i32_1 = arith.constant 0 : i32
    return %arg0, %c0_i32, %c0_i32_0 : i32, i32, i32
  }
}

</mosaic_0001>

<llo_original>
// kernel: tpu_custom_call.1
$region0: #{tpu_custom_call.1}
  #allocation0 [shape = 'u32[]', space=smem, size = 0x4, offset = 0x4, fixed_abs, tag = 'smem constant byte address 0x4 - core index']
  #allocation1 [shape = 'u32[144,128]{1,0:T(1,128)}', space=vmem, size = 0x12000, scoped, tag = 'internal scratch']
  %s0 = inlined_call_operand.hbm [shape: f32[2,4,256], index: 0, kind: input, shape index: {}]
  %s1 = inlined_call_operand.vmem [shape: s32[2,256], index: 1, kind: input, shape index: {}]
  %s2 = inlined_call_operand.vmem [shape: f32[2,5], index: 2, kind: input, shape index: {}]
  %s3 = inlined_call_operand.vmem [shape: s32[2,1], index: 3, kind: input, shape index: {}]
  %s4 = inlined_call_operand.hbm [shape: f32[1,2,4], index: 4, kind: output, shape index: {0}]
  %s5 = inlined_call_operand.hbm [shape: f32[1,2,4], index: 5, kind: output, shape index: {1}]
  %s6 = inlined_call_operand.hbm [shape: f32[1,2,4], index: 6, kind: output, shape index: {2}]
  %s7 = inlined_call_operand.vmem [shape: f32[1,2,1], index: 7, kind: output, shape index: {3}]
  %8 = xla_tuple %s4, %s5, %s6, %s7
  %s9 = sld [smem:[#allocation0]]
  $region62: #{tpu_custom_call.1} parent=0
    _
  %s11 = ssub.s32 1, %s9
  %s12 = scalar_select 0, %s11, %s9
  $region1: #{tpu_custom_call.1} parent=0
    #allocation2 [shape = 'u8[8192]{0}', space=vmem, size = 0x2000, scoped, tag = 'input window, operand 0, single buffered']
    #allocation3 [shape = 's32[1]{0}', space=sflag, size = 0x4, scoped, tag = 'scoped memory for tpu_custom_call.1']
    #allocation4 [shape = 's32[1]{0}', space=sflag, size = 0x4, scoped, tag = 'scoped memory for tpu_custom_call.1']
    #allocation5 [shape = 'u8[1024]{0}', space=vmem, size = 0x400, scoped, tag = 'output window, operand 0, single buffered']
    #allocation6 [shape = 'u8[1024]{0}', space=vmem, size = 0x400, scoped, tag = 'output window, operand 1, single buffered']
    #allocation7 [shape = 's32[1]{0}', space=sflag, size = 0x4, scoped, tag = 'scoped memory for tpu_custom_call.1']
    #allocation8 [shape = 'u8[1024]{0}', space=vmem, size = 0x400, scoped, tag = 'output window, operand 2, single buffered']
    %13 = vsyncpa [#allocation3], 0
    %14 = vsyncpa [#allocation4], 0
    %15 = vsyncpa [#allocation7], 0
    // Predicated region
    $region2: #{tpu_custom_call.1} parent=1 // pred_check
      _
    $region3: #{tpu_custom_call.1} parent=1 // pred_check_branch
      %17 = sbr.rel (0) target = $region5
    $region4: #{tpu_custom_call.1} parent=1 // pred_region
      %s18 = sadd.s32 0, 0
      %p19 = scmp.lt.s32.totalorder %s18, 0
      %s20 = scalar_select %p19, %s18, 0
      %s21 = smul.u32 2, %s20
      %s23 = ssub.s32 256, 256
      %24 = vsyncadd [#allocation3], %s23
      %s25 = smul.addr %s21, 64
      %s26 = scalar_lea.hbm %s0, %s25
      %s27 = sshll.u32 [#allocation2], 4
      %s28 = int_to_ptr.vmem [resolvable:$true] %s27
      %33 = dma.hbm_to_vmem [thread:$0]  %s26, 256, %s28, [#allocation3], 128, 128, 8
    $region5: #{tpu_custom_call.1} parent=1 // pred_fallthru
      _
    // Predicated region
    $region6: #{tpu_custom_call.1} parent=1 // pred_check
      _
    $region7: #{tpu_custom_call.1} parent=1 // pred_check_branch
      %35 = sbr.rel (0) target = $region9
    $region8: #{tpu_custom_call.1} parent=1 // pred_region
      %s36 = sadd.s32 0, 0
      %p37 = scmp.lt.s32.totalorder %s36, 0
      %s38 = scalar_select %p37, %s36, 0
      %s39 = smul.u32 2, %s38
      %p40 = scmp.lt.s32.totalorder %s39, 1
      %s41 = scalar_select %p40, %s39, 1
      %s42 = smul.addr %s41, 2
      %s43 = scalar_lea.vmem %s1, %s42
      %s44 = sadd.s32 0, 0
      %p45 = scmp.lt.s32.totalorder %s44, 0
      %s46 = scalar_select %p45, %s44, 0
      %s47 = smul.u32 2, %s46
    $region9: #{tpu_custom_call.1} parent=1 // pred_fallthru
      _
    // Predicated region
    $region10: #{tpu_custom_call.1} parent=1 // pred_check
      _
    $region11: #{tpu_custom_call.1} parent=1 // pred_check_branch
      %49 = sbr.rel (0) target = $region13
    $region12: #{tpu_custom_call.1} parent=1 // pred_region
      _
    $region13: #{tpu_custom_call.1} parent=1 // pred_fallthru
      _
    // Predicated region
    $region14: #{tpu_custom_call.1} parent=1 // pred_check
      _
    $region15: #{tpu_custom_call.1} parent=1 // pred_check_branch
      %51 = sbr.rel (0) target = $region17
    $region16: #{tpu_custom_call.1} parent=1 // pred_region
      _
    $region17: #{tpu_custom_call.1} parent=1 // pred_fallthru
      _
    // Predicated region
    $region18: #{tpu_custom_call.1} parent=1 // pred_check
      _
    $region19: #{tpu_custom_call.1} parent=1 // pred_check_branch
      %53 = sbr.rel (0) target = $region21
    $region20: #{tpu_custom_call.1} parent=1 // pred_region
      %54 = dma.done [#allocation3], 256
    $region21: #{tpu_custom_call.1} parent=1 // pred_fallthru
      _
    %s55 = sadd.s32 0, 0
    %p56 = scmp.lt.s32.totalorder %s55, 0
    %s57 = scalar_select %p56, %s55, 0
    %s58 = smul.u32 2, %s57
    %p59 = scmp.lt.s32.totalorder %s58, 1
    %s60 = scalar_select %p59, %s58, 1
    %s61 = smul.addr %s60, 2
    %s62 = scalar_lea.vmem %s1, %s61
    %s63 = sadd.s32 0, 0
    %p64 = scmp.lt.s32.totalorder %s63, 0
    %s65 = scalar_select %p64, %s63, 0
    %s66 = smul.u32 2, %s65
    %s67 = sadd.s32 0, 0
    %p68 = scmp.lt.s32.totalorder %s67, 0
    %s69 = scalar_select %p68, %s67, 0
    %s70 = smul.u32 2, %s69
    %p71 = scmp.lt.s32.totalorder %s70, 1
    %s72 = scalar_select %p71, %s70, 1
    %s73 = smul.addr %s72, 2
    %s74 = scalar_lea.vmem %s1, %s73
    %s75 = sadd.s32 0, 0
    %p76 = scmp.lt.s32.totalorder %s75, 0
    %s77 = scalar_select %p76, %s75, 0
    %s78 = smul.u32 2, %s77
    %p79 = scmp.eq.s32.totalorder 0, 0
    // Predicated region
    $region22: #{tpu_custom_call.1} parent=1 // pred_check
      %p80 = pneg %p79
    $region23: #{tpu_custom_call.1} parent=1 // pred_check_branch
      %82 = sbr.rel (%p80) target = $region25
    $region24: #{tpu_custom_call.1} parent=1 // pred_region
      %vm83 = vcmask 25600
      %84 = vst.msk [vmem:[#allocation5] sm:$0x3] %vm83, 0.0
      %85 = vst.msk [vmem:[#allocation6] sm:$0x3] %vm83, 0.0
      %86 = vst.msk [vmem:[#allocation8] sm:$0x3] %vm83, 0.0
    $region25: #{tpu_custom_call.1} parent=1 // pred_fallthru
      _
    %p87 = scmp.eq.s32.totalorder 0, 0
    %p88 = pnand %p79, %p87
    %p89 = pneg %p88
    // Predicated region
    $region26: #{tpu_custom_call.1} parent=1 // pred_check
      _
    $region27: #{tpu_custom_call.1} parent=1 // pred_check_branch
      %91 = sbr.rel (%p88) target = $region29
    $region28: #{tpu_custom_call.1} parent=1 // pred_region
      %v92 = vld [vmem:[%s2] sm:$0x3]
      %v93 = vld [vmem:[%s3] sm:$0x3]
      %vm94 = vcmask 33792
      %v95 = vsel %vm94, %v92, -inf
      %96 = vmax.xlane.f32.xlu0 %v95
      %v97 = vpop.xlane.xlu0 %96
      %v98 = vsub.f32 %v92, %v97
      %v99 = vmul.f32 %v98, 1.442695
      %v100 = vpow.pop %v99
      %v101 = vsel %vm94, %v100, 0.0
      %102 = vadd.xlane.f32.xlu0 %v101
      %v103 = vpop.xlane.xlu0 %102
      %v104 = vlog2.pop %v103
      %v105 = vmul.f32 %v104, 0.6931472
      %v106 = vadd.f32 %v105, %v97
      %v107 = vlaneseq
      %v108 = vand.u32 %v107, 127
      %109 = vset.pattern.permute.xlu0 0
      %110 = vperm.xlu0 %109, %v93
      %v111 = vpop.permute.xlu0 %110
      %vm112 = vcmp.eq.s32.totalorder %v108, %v111
      %v113 = vsel %vm112, %v92, 0.0
      %v114 = vsel %vm94, %v113, 0.0
      %115 = vadd.xlane.f32.xlu0 %v114
      %v116 = vpop.xlane.xlu0 %115
      %v117 = vsub.f32 %v106, %v116
      %vm118 = vcmask 1024
      %119 = vst.msk [vmem:[%s7] sm:$0x3] %vm118, %v117
    $region29: #{tpu_custom_call.1} parent=1 // pred_fallthru
      _
    %v120 = vld [vmem:[#allocation2] sm:$0xff]
    %v121 = vld [vmem:[#allocation2 + $0x8] sm:$0xff]
    %v124 = vcombine.high %v120, %v120
    %v125 = vcombine.high %v121, %v121
    %vm128 = vcmask 1043456
    %v129 = vsel %vm128, %v120, -inf
    %v130 = vrot.slane %v129, 4
    %v131 = vmax.f32 %v129, %v130
    %v132 = vrot.slane %v131, 2
    %v133 = vmax.f32 %v131, %v132
    %v134 = vrot.slane %v133, 1
    %v135 = vmax.f32 %v133, %v134
    %v136 = vsel %vm128, %v124, -inf
    %v137 = vrot.slane %v136, 4
    %v138 = vmax.f32 %v136, %v137
    %v139 = vrot.slane %v138, 2
    %v140 = vmax.f32 %v138, %v139
    %v141 = vrot.slane %v140, 1
    %v142 = vmax.f32 %v140, %v141
    %v143 = vsel %vm128, %v121, -inf
    %v144 = vrot.slane %v143, 4
    %v145 = vmax.f32 %v143, %v144
    %v146 = vrot.slane %v145, 2
    %v147 = vmax.f32 %v145, %v146
    %v148 = vrot.slane %v147, 1
    %v149 = vmax.f32 %v147, %v148
    %v150 = vsel %vm128, %v125, -inf
    %v151 = vrot.slane %v150, 4
    %v152 = vmax.f32 %v150, %v151
    %v153 = vrot.slane %v152, 2
    %v154 = vmax.f32 %v152, %v153
    %v155 = vrot.slane %v154, 1
    %v156 = vmax.f32 %v154, %v155
    %v161 = vcombine.low %v135, %v142
    %v162 = vcombine.low %v149, %v156
    %v165 = vsub.f32 %v120, %v161
    %v166 = vsub.f32 %v121, %v162
    %v167 = vmul.f32 %v165, 1.442695
    %v168 = vpow.pop %v167
    %v169 = vmul.f32 %v166, 1.442695
    %v170 = vpow.pop %v169
    %v173 = vcombine.high %v168, %v168
    %v174 = vcombine.high %v170, %v170
    %v177 = vsel %vm128, %v168, 0.0
    %v178 = vrot.slane %v177, 4
    %v179 = vadd.f32 %v177, %v178
    %v180 = vrot.slane %v179, 2
    %v181 = vadd.f32 %v179, %v180
    %v182 = vrot.slane %v181, 1
    %v183 = vadd.f32 %v181, %v182
    %v184 = vsel %vm128, %v173, 0.0
    %v185 = vrot.slane %v184, 4
    %v186 = vadd.f32 %v184, %v185
    %v187 = vrot.slane %v186, 2
    %v188 = vadd.f32 %v186, %v187
    %v189 = vrot.slane %v188, 1
    %v190 = vadd.f32 %v188, %v189
    %v191 = vsel %vm128, %v170, 0.0
    %v192 = vrot.slane %v191, 4
    %v193 = vadd.f32 %v191, %v192
    %v194 = vrot.slane %v193, 2
    %v195 = vadd.f32 %v193, %v194
    %v196 = vrot.slane %v195, 1
    %v197 = vadd.f32 %v195, %v196
    %v198 = vsel %vm128, %v174, 0.0
    %v199 = vrot.slane %v198, 4
    %v200 = vadd.f32 %v198, %v199
    %v201 = vrot.slane %v200, 2
    %v202 = vadd.f32 %v200, %v201
    %v203 = vrot.slane %v202, 1
    %v204 = vadd.f32 %v202, %v203
    %v205 = vrcp.pop %v183
    %v206 = vrcp.pop %v190
    %v207 = vrcp.pop %v197
    %v208 = vrcp.pop %v204
    %v213 = vcombine.low %v205, %v206
    %v214 = vcombine.low %v207, %v208
    %v217 = vmul.f32 %v168, %v213
    %v218 = vmul.f32 %v170, %v214
    %v219 = vld [vmem:[%s74] sm:$0xf]
    %v220 = vlaneseq
    %v221 = vshrl.u32 %v220, 7
    %v223 = vunpack.c.l.s4 1966171168
    %v224 = vunpack.c.0.s8 %v223
    %v225 = vlaneseq
    %v226 = vshrl.u32 %v225, 7
    %v227 = vsub.s32 %v224, %v226
    %v228 = vrot.slane %v219, %v227
    %v229 = vcombine.high %v228, %v228
    %v230 = vlaneseq
    %v231 = vshrl.u32 %v230, 7
    %v232 = vsub.s32 0, %v231
    %v233 = vrot.slane %v228, %v232
    %v234 = vlaneseq
    %v235 = vshrl.u32 %v234, 7
    %v236 = vsub.s32 1, %v235
    %v237 = vrot.slane %v228, %v236
    %v238 = vlaneseq
    %v239 = vshrl.u32 %v238, 7
    %v240 = vsub.s32 0, %v239
    %v241 = vrot.slane %v229, %v240
    %v242 = vlaneseq
    %v243 = vshrl.u32 %v242, 7
    %v244 = vsub.s32 1, %v243
    %v245 = vrot.slane %v229, %v244
    %vm246 = vcmp.eq.s32.totalorder %v221, %v233
    %vm247 = vcmp.eq.s32.totalorder %v221, %v237
    %vm248 = vcmp.eq.s32.totalorder %v221, %v241
    %vm249 = vcmp.eq.s32.totalorder %v221, %v245
    %v250 = vsel %vm246, 1, 0
    %v251 = vsel %vm247, 1, 0
    %v252 = vsel %vm248, 1, 0
    %v253 = vsel %vm249, 1, 0
    %v254 = vcvt.s32.f32 %v250
    %v255 = vcvt.s32.f32 %v251
    %v256 = vcvt.s32.f32 %v252
    %v257 = vcvt.s32.f32 %v253
    %v258 = vld [vmem:[#allocation5] sm:$0x3]
    %v263 = vcombine.low %v254, %v255
    %v264 = vcombine.low %v256, %v257
    %v267 = vmul.f32 %v217, %v263
    %v268 = vmul.f32 %v218, %v264
    %v271 = vcombine.high %v267, %v267
    %v272 = vcombine.high %v268, %v268
    %v275 = vsel %vm128, %v267, 0.0
    %v276 = vsel %vm128, %v271, 0.0
    %v277 = vadd.f32 %v275, %v276
    %278 = vadd.xlane.f32.xlu0 %v277
    %v279 = vpop.xlane.xlu0 %278
    %v280 = vsel %vm128, %v268, 0.0
    %v281 = vsel %vm128, %v272, 0.0
    %v282 = vadd.f32 %v280, %v281
    %283 = vadd.xlane.f32.xlu0 %v282
    %v284 = vpop.xlane.xlu0 %283
    %v287 = vlaneseq
    %v288 = vand.u32 %v287, 127
    %v289 = vlaneseq
    %v290 = vshrl.u32 %v289, 7
    %v291 = vsub.s32 %v288, %v290
    %v292 = vrot.slane %v279, %v291
    %v293 = vlaneseq
    %v294 = vshrl.u32 %v293, 7
    %v295 = vsub.s32 %v288, %v294
    %v296 = vrot.slane %v284, %v295
    %vm297 = vcmask 1041409
    %v298 = vsel %vm297, %v296, %v292
    %v300 = vadd.f32 %v258, %v298
    %vm301 = vcmask 25600
    %302 = vst.msk [vmem:[#allocation5] sm:$0x3] %vm301, %v300
    %v303 = vld [vmem:[#allocation6] sm:$0x3]
    %v306 = vcombine.high %v217, %v217
    %v307 = vcombine.high %v218, %v218
    %v310 = vsel %vm128, %v217, 0.0
    %v311 = vsel %vm128, %v306, 0.0
    %v312 = vadd.f32 %v310, %v311
    %313 = vadd.xlane.f32.xlu0 %v312
    %v314 = vpop.xlane.xlu0 %313
    %v315 = vsel %vm128, %v218, 0.0
    %v316 = vsel %vm128, %v307, 0.0
    %v317 = vadd.f32 %v315, %v316
    %318 = vadd.xlane.f32.xlu0 %v317
    %v319 = vpop.xlane.xlu0 %318
    %v322 = vlaneseq
    %v323 = vshrl.u32 %v322, 7
    %v324 = vsub.s32 %v288, %v323
    %v325 = vrot.slane %v314, %v324
    %v326 = vlaneseq
    %v327 = vshrl.u32 %v326, 7
    %v328 = vsub.s32 %v288, %v327
    %v329 = vrot.slane %v319, %v328
    %v330 = vsel %vm297, %v329, %v325
    %v332 = vadd.f32 %v303, %v330
    %333 = vst.msk [vmem:[#allocation6] sm:$0x3] %vm301, %v332
    %v334 = vld [vmem:[#allocation8] sm:$0x3]
    %v335 = vsel %vm128, %v254, 0.0
    %v336 = vsel %vm128, %v255, 0.0
    %v337 = vadd.f32 %v335, %v336
    %338 = vadd.xlane.f32.xlu0 %v337
    %v339 = vpop.xlane.xlu0 %338
    %v340 = vsel %vm128, %v256, 0.0
    %v341 = vsel %vm128, %v257, 0.0
    %v342 = vadd.f32 %v340, %v341
    %343 = vadd.xlane.f32.xlu0 %v342
    %v344 = vpop.xlane.xlu0 %343
    %v347 = vlaneseq
    %v348 = vshrl.u32 %v347, 7
    %v349 = vsub.s32 %v288, %v348
    %v350 = vrot.slane %v339, %v349
    %v351 = vlaneseq
    %v352 = vshrl.u32 %v351, 7
    %v353 = vsub.s32 %v288, %v352
    %v354 = vrot.slane %v344, %v353
    %v355 = vsel %vm297, %v354, %v350
    %v357 = vadd.f32 %v334, %v355
    %358 = vst.msk [vmem:[#allocation8] sm:$0x3] %vm301, %v357
    // Predicated region
    $region30: #{tpu_custom_call.1} parent=1 // pred_check
      _
    $region31: #{tpu_custom_call.1} parent=1 // pred_check_branch
      %360 = sbr.rel (0) target = $region33
    $region32: #{tpu_custom_call.1} parent=1 // pred_region
      %s362 = ssub.s32 32, 32
      %363 = vsyncadd [#allocation4], %s362
      %s365 = sshll.u32 [#allocation5], 4
      %s366 = int_to_ptr.vmem [resolvable:$true] %s365
      %368 = dma.vmem_to_hbm [thread:$0]  %s366, 32, %s4, [#allocation4]
    $region33: #{tpu_custom_call.1} parent=1 // pred_fallthru
      _
    // Predicated region
    $region34: #{tpu_custom_call.1} parent=1 // pred_check
      _
    $region35: #{tpu_custom_call.1} parent=1 // pred_check_branch
      %370 = sbr.rel (0) target = $region37
    $region36: #{tpu_custom_call.1} parent=1 // pred_region
      %s372 = ssub.s32 32, 32
      %373 = vsyncadd [#allocation7], %s372
      %s375 = sshll.u32 [#allocation6], 4
      %s376 = int_to_ptr.vmem [resolvable:$true] %s375
      %378 = dma.vmem_to_hbm [thread:$0]  %s376, 32, %s5, [#allocation7]
    $region37: #{tpu_custom_call.1} parent=1 // pred_fallthru
      _
    // Predicated region
    $region38: #{tpu_custom_call.1} parent=1 // pred_check
      _
    $region39: #{tpu_custom_call.1} parent=1 // pred_check_branch
      %380 = sbr.rel (0) target = $region41
    $region40: #{tpu_custom_call.1} parent=1 // pred_region
      %s382 = ssub.s32 32, 32
      %383 = vsyncadd [#allocation7], %s382
      %s385 = sshll.u32 [#allocation8], 4
      %s386 = int_to_ptr.vmem [resolvable:$true] %s385
      %388 = dma.vmem_to_hbm [thread:$0]  %s386, 32, %s6, [#allocation7]
    $region41: #{tpu_custom_call.1} parent=1 // pred_fallthru
      _
    // Predicated region
    $region42: #{tpu_custom_call.1} parent=1 // pred_check
      _
    $region43: #{tpu_custom_call.1} parent=1 // pred_check_branch
      %390 = sbr.rel (0) target = $region45
    $region44: #{tpu_custom_call.1} parent=1 // pred_region
      _
    $region45: #{tpu_custom_call.1} parent=1 // pred_fallthru
      _
    // Predicated region
    $region46: #{tpu_custom_call.1} parent=1 // pred_check
      _
    $region47: #{tpu_custom_call.1} parent=1 // pred_check_branch
      %392 = sbr.rel (0) target = $region49
    $region48: #{tpu_custom_call.1} parent=1 // pred_region
      %393 = dma.done [#allocation4], 32
    $region49: #{tpu_custom_call.1} parent=1 // pred_fallthru
      _
    // Predicated region
    $region50: #{tpu_custom_call.1} parent=1 // pred_check
      _
    $region51: #{tpu_custom_call.1} parent=1 // pred_check_branch
      %395 = sbr.rel (0) target = $region53
    $region52: #{tpu_custom_call.1} parent=1 // pred_region
      %396 = dma.done [#allocation7], 32
    $region53: #{tpu_custom_call.1} parent=1 // pred_fallthru
      _
    // Predicated region
    $region54: #{tpu_custom_call.1} parent=1 // pred_check
      _
    $region55: #{tpu_custom_call.1} parent=1 // pred_check_branch
      %398 = sbr.rel (0) target = $region57
    $region56: #{tpu_custom_call.1} parent=1 // pred_region
      %399 = dma.done [#allocation7], 32
    $region57: #{tpu_custom_call.1} parent=1 // pred_fallthru
      _
    // Predicated region
    $region58: #{tpu_custom_call.1} parent=1 // pred_check
      _
    $region59: #{tpu_custom_call.1} parent=1 // pred_check_branch
      %401 = sbr.rel (0) target = $region61
    $region60: #{tpu_custom_call.1} parent=1 // pred_region
      _
    $region61: #{tpu_custom_call.1} parent=1 // pred_fallthru
      _
    %402 = vsyncpa [#allocation3], 1
    %403 = vsyncpa [#allocation4], 1
    %404 = vsyncpa [#allocation7], 1

</llo_original>
